<compile_context>
chip_gen: v6e
topology: v6e:2x2x1
jax: 0.10.0
libtpu: 0.0.40
codegen_flags: <defaults>
</compile_context>

<pallas_src>
import functools

import jax
import jax.numpy as jnp
from jax import lax
from jax.experimental import pallas as pl
from jax.experimental.pallas import tpu as pltpu


def _critic_kernel(x_ref, w1_ref, b1_ref, w2_ref, b2_ref,
                   w3_ref, b3_ref, w4_ref, b4_ref, o_ref, *, bf16_epilogue):
    def hidden(a_bf16, w_ref, b_ref):
        # bf16 MXU matmul, f32 accumulation, f32 bias add.
        z = jnp.dot(a_bf16, w_ref[...],
                    preferred_element_type=jnp.float32) + b_ref[...]
        if bf16_epilogue:
            # v6e/v7x: bf16 EUP tanh, result already MXU-ready for next layer.
            return jnp.tanh(z.astype(jnp.bfloat16))
        # v5e: f32 tanh (no bf16 EUP), cast for the next matmul.
        return jnp.tanh(z).astype(jnp.bfloat16)

    h1 = hidden(x_ref[...], w1_ref, b1_ref)          # (tile_b, H1) bf16
    h2 = hidden(h1, w2_ref, b2_ref)                  # (tile_b, H2) bf16
    h3 = hidden(h2, w3_ref, b3_ref)                  # (tile_b, H2) bf16

    # Final Linear(H2, 1) as a lane-dense (1,H) @ (tile_b,H)^T MXU matmul.
    out_row = lax.dot_general(w4_ref[...], h3, (((1,), (1,)), ((), ())),
                              preferred_element_type=jnp.float32)   # (1, tile_b)
    o_ref[...] = (out_row + b4_ref[0, 0]).astype(o_ref.dtype)


def _round_up(n, m):
    return ((n + m - 1) // m) * m


def _default_bf16_epilogue():
    kind = jax.devices()[0].device_kind.lower()
    return ("v6" in kind) or ("v7" in kind)


def a2c_critic_forward(x, params, tile_b=1024, bf16_epilogue=None):
    """x: [B, state_size] float32; params: dict of weights/biases.

    Weights are stored as [in_features, out_features] so each layer is
    X @ W + b; biases are [1, out_features]; w4 is [hidsize2, 1], b4 is [1, 1].
    """
    if bf16_epilogue is None:
        bf16_epilogue = _default_bf16_epilogue()

    B, S = x.shape
    H1 = params["w1"].shape[1]
    H2 = params["w2"].shape[1]

    # Batch padding: multiple of 16 (bf16 sublane packing), tile aligned.
    b_pad = _round_up(B, 16)
    tile_b = _round_up(min(int(tile_b), 2048), 16)
    tile_b = min(tile_b, b_pad)
    b_pad = _round_up(b_pad, tile_b)

    # Stream x in bf16 (halves per-step DMA bytes); pad rows are zeros.
    x_bf16 = x.astype(jnp.bfloat16)
    if b_pad != B:
        x_bf16 = jnp.pad(x_bf16, ((0, b_pad - B), (0, 0)))

    # bf16 weights for the MXU path; biases stay f32; b4 is a scalar in SMEM.
    bf = jnp.bfloat16
    w1 = params["w1"].astype(bf)
    w2 = params["w2"].astype(bf)
    w3 = params["w3"].astype(bf)
    b1, b2, b3 = params["b1"], params["b2"], params["b3"]
    w4_row = jnp.reshape(params["w4"], (1, H2)).astype(bf)
    b4 = jnp.reshape(params["b4"], (1, 1)).astype(jnp.float32)

    resident = lambda i: (0, 0)       # weights/biases: same block every tile
    grid = (b_pad // tile_b,)

    kernel = functools.partial(_critic_kernel, bf16_epilogue=bool(bf16_epilogue))

    out = pl.pallas_call(
        kernel,
        out_shape=jax.ShapeDtypeStruct((1, b_pad), jnp.float32),
        grid=grid,
        in_specs=[
            pl.BlockSpec((tile_b, S), lambda i: (i, 0)),        # x tile (pipelined)
            pl.BlockSpec((S, H1), resident),                    # w1
            pl.BlockSpec((1, H1), resident),                    # b1
            pl.BlockSpec((H1, H2), resident),                   # w2
            pl.BlockSpec((1, H2), resident),                    # b2
            pl.BlockSpec((H2, H2), resident),                   # w3
            pl.BlockSpec((1, H2), resident),                    # b3
            pl.BlockSpec((1, H2), resident),                    # w4 row
            pl.BlockSpec(memory_space=pltpu.MemorySpace.SMEM),  # b4 scalar
        ],
        out_specs=pl.BlockSpec((1, tile_b), lambda i: (0, i)),  # lane-dense output
        compiler_params=pltpu.CompilerParams(
            dimension_semantics=("parallel",)),
    )(x_bf16, w1, b1, w2, b2, w3, b3, w4_row, b4)

    return out.reshape(b_pad, 1)[:B]


def _init_linear(key, fan_in, fan_out):
    # Mimics PyTorch nn.Linear default init: U(-k, k), k = 1/sqrt(fan_in).
    kw, kb = jax.random.split(key)
    bound = 1.0 / jnp.sqrt(fan_in)
    w = jax.random.uniform(kw, (fan_in, fan_out), jnp.float32, -bound, bound)
    b = jax.random.uniform(kb, (1, fan_out), jnp.float32, -bound, bound)
    return w, b


def make_params(key, state_size, hidsize1, hidsize2):
    k1, k2, k3, k4 = jax.random.split(key, 4)
    w1, b1 = _init_linear(k1, state_size, hidsize1)   # shared: state -> hid1
    w2, b2 = _init_linear(k2, hidsize1, hidsize2)     # shared: hid1  -> hid2
    w3, b3 = _init_linear(k3, hidsize2, hidsize2)     # head:   hid2  -> hid2
    w4, b4 = _init_linear(k4, hidsize2, 1)            # head:   hid2  -> 1
    return dict(w1=w1, b1=b1, w2=w2, b2=b2, w3=w3, b3=b3, w4=w4, b4=b4)


def _reference_f32(x, p):
    h1 = jnp.tanh(x @ p["w1"] + p["b1"])
    h2 = jnp.tanh(h1 @ p["w2"] + p["b2"])
    h3 = jnp.tanh(h2 @ p["w3"] + p["b3"])
    return h3 @ p["w4"] + p["b4"]


def _reference_kernel_numerics(x, p, bf16_epilogue):
    # Mirrors the kernel: bf16 inputs/weights, f32 accumulation, f32 bias,
    # tanh in bf16 (v6e/v7x) or f32 (v5e), final layer as bf16 MXU matmul.
    bf = jnp.bfloat16
    a = x.astype(bf)
    for wk, bk in (("w1", "b1"), ("w2", "b2"), ("w3", "b3")):
        z = jnp.dot(a, p[wk].astype(bf),
                    preferred_element_type=jnp.float32) + p[bk]
        a = jnp.tanh(z.astype(bf)) if bf16_epilogue else jnp.tanh(z).astype(bf)
    w4_row = jnp.reshape(p["w4"], (1, -1)).astype(bf)
    out = lax.dot_general(w4_row, a, (((1,), (1,)), ((), ())),
                          preferred_element_type=jnp.float32) + p["b4"][0, 0]
    return out.reshape(-1, 1)


if __name__ == "__main__":
    # Small shapes consistent with the module's MLP structure.
    batch, state_size, hidsize1, hidsize2 = 8, 64, 128, 128

    key = jax.random.PRNGKey(0)
    kx, kp, kx2 = jax.random.split(key, 3)
    x = jax.random.normal(kx, (batch, state_size), jnp.float32)
    params = make_params(kp, state_size, hidsize1, hidsize2)

    bf16_ep = _default_bf16_epilogue()
    # jit so weight casts are fused with the call instead of standalone ops.
    fwd = jax.jit(a2c_critic_forward, static_argnames=("tile_b", "bf16_epilogue"))

    out = jax.block_until_ready(fwd(x, params, bf16_epilogue=bf16_ep))
    assert out.shape == (batch, 1)
    assert jnp.allclose(out, _reference_kernel_numerics(x, params, bf16_ep),
                        atol=2e-2, rtol=2e-2), "mismatch vs kernel-matched reference"
    assert jnp.allclose(out, _reference_f32(x, params),
                        atol=5e-2, rtol=5e-2), "mismatch vs f32 reference"

    # Exercise the multi-tile grid + tail padding + lane-dense reshape path
    # (B not a multiple of tile_b, grid > 1).
    x2 = jax.random.normal(kx2, (200, state_size), jnp.float32)
    out2 = jax.block_until_ready(fwd(x2, params, tile_b=64, bf16_epilogue=bf16_ep))
    assert out2.shape == (200, 1)
    assert jnp.allclose(out2, _reference_kernel_numerics(x2, params, bf16_ep),
                        atol=2e-2, rtol=2e-2), "mismatch vs kernel-matched reference (gridded)"
    assert jnp.allclose(out2, _reference_f32(x2, params),
                        atol=5e-2, rtol=5e-2), "mismatch vs f32 reference (gridded)"

    print("KERNEL_OK")
</pallas_src>

<mosaic_0001>
module attributes {stable_mosaic.version = 11 : i64} {
  func.func @_critic_kernel(%arg0: i32, %arg1: memref<16x64xbf16, #tpu.memory_space<vmem>>, %arg2: memref<64x128xbf16, #tpu.memory_space<vmem>>, %arg3: memref<1x128xf32, #tpu.memory_space<vmem>>, %arg4: memref<128x128xbf16, #tpu.memory_space<vmem>>, %arg5: memref<1x128xf32, #tpu.memory_space<vmem>>, %arg6: memref<128x128xbf16, #tpu.memory_space<vmem>>, %arg7: memref<1x128xf32, #tpu.memory_space<vmem>>, %arg8: memref<1x128xbf16, #tpu.memory_space<vmem>>, %arg9: memref<1x1xf32, #tpu.memory_space<smem>>, %arg10: memref<1x16xf32, #tpu.memory_space<vmem>>) attributes {dimension_semantics = [#tpu.dimension_semantics<parallel>], iteration_bounds = array<i64: 1>, scalar_prefetch = 0 : i64, scratch_operands = 0 : i64, tpu.core_type = #tpu.core_type<tc>, window_params = [{transform_indices = @transform_0, window_bounds = array<i64: 16, 64>}, {pipeline_mode = #tpu.pipeline_mode<synchronous>, transform_indices = @transform_1, window_bounds = array<i64: 64, 128>}, {pipeline_mode = #tpu.pipeline_mode<synchronous>, transform_indices = @transform_2, window_bounds = array<i64: 1, 128>}, {pipeline_mode = #tpu.pipeline_mode<synchronous>, transform_indices = @transform_3, window_bounds = array<i64: 128, 128>}, {pipeline_mode = #tpu.pipeline_mode<synchronous>, transform_indices = @transform_4, window_bounds = array<i64: 1, 128>}, {pipeline_mode = #tpu.pipeline_mode<synchronous>, transform_indices = @transform_5, window_bounds = array<i64: 128, 128>}, {pipeline_mode = #tpu.pipeline_mode<synchronous>, transform_indices = @transform_6, window_bounds = array<i64: 1, 128>}, {pipeline_mode = #tpu.pipeline_mode<synchronous>, transform_indices = @transform_7, window_bounds = array<i64: 1, 128>}, {transform_indices = @transform_8, window_bounds = array<i64: 1, 1>}, {transform_indices = @transform_9, window_bounds = array<i64: 1, 16>}]} {
    %c0 = arith.constant 0 : index
    %c0_0 = arith.constant 0 : index
    %0 = vector.load %arg1[%c0, %c0_0] : memref<16x64xbf16, #tpu.memory_space<vmem>>, vector<16x64xbf16>
    %c0_1 = arith.constant 0 : index
    %c0_2 = arith.constant 0 : index
    %1 = vector.load %arg2[%c0_1, %c0_2] : memref<64x128xbf16, #tpu.memory_space<vmem>>, vector<64x128xbf16>
    %cst = arith.constant dense<0.000000e+00> : vector<16x128xf32>
    %2 = tpu.matmul %0, %1, %cst {dimension_numbers = #tpu.dot_dimension_numbers<[1], [0], [0], [1], [0, 0, 1, 1], [], []>} : vector<16x64xbf16>, vector<64x128xbf16>, vector<16x128xf32> -> vector<16x128xf32>
    %c0_3 = arith.constant 0 : index
    %c0_4 = arith.constant 0 : index
    %3 = vector.load %arg3[%c0_3, %c0_4] : memref<1x128xf32, #tpu.memory_space<vmem>>, vector<1x128xf32>
    %4 = vector.broadcast %3 : vector<1x128xf32> to vector<16x128xf32>
    %5 = arith.addf %2, %4 : vector<16x128xf32>
    %6 = math.tanh %5 : vector<16x128xf32>
    %7 = arith.truncf %6 : vector<16x128xf32> to vector<16x128xbf16>
    %c0_5 = arith.constant 0 : index
    %c0_6 = arith.constant 0 : index
    %8 = vector.load %arg4[%c0_5, %c0_6] : memref<128x128xbf16, #tpu.memory_space<vmem>>, vector<128x128xbf16>
    %cst_7 = arith.constant dense<0.000000e+00> : vector<16x128xf32>
    %9 = tpu.matmul %7, %8, %cst_7 {dimension_numbers = #tpu.dot_dimension_numbers<[1], [0], [0], [1], [0, 0, 1, 1], [], []>} : vector<16x128xbf16>, vector<128x128xbf16>, vector<16x128xf32> -> vector<16x128xf32>
    %c0_8 = arith.constant 0 : index
    %c0_9 = arith.constant 0 : index
    %10 = vector.load %arg5[%c0_8, %c0_9] : memref<1x128xf32, #tpu.memory_space<vmem>>, vector<1x128xf32>
    %11 = vector.broadcast %10 : vector<1x128xf32> to vector<16x128xf32>
    %12 = arith.addf %9, %11 : vector<16x128xf32>
    %13 = math.tanh %12 : vector<16x128xf32>
    %14 = arith.truncf %13 : vector<16x128xf32> to vector<16x128xbf16>
    %c0_10 = arith.constant 0 : index
    %c0_11 = arith.constant 0 : index
    %15 = vector.load %arg6[%c0_10, %c0_11] : memref<128x128xbf16, #tpu.memory_space<vmem>>, vector<128x128xbf16>
    %cst_12 = arith.constant dense<0.000000e+00> : vector<16x128xf32>
    %16 = tpu.matmul %14, %15, %cst_12 {dimension_numbers = #tpu.dot_dimension_numbers<[1], [0], [0], [1], [0, 0, 1, 1], [], []>} : vector<16x128xbf16>, vector<128x128xbf16>, vector<16x128xf32> -> vector<16x128xf32>
    %c0_13 = arith.constant 0 : index
    %c0_14 = arith.constant 0 : index
    %17 = vector.load %arg7[%c0_13, %c0_14] : memref<1x128xf32, #tpu.memory_space<vmem>>, vector<1x128xf32>
    %18 = vector.broadcast %17 : vector<1x128xf32> to vector<16x128xf32>
    %19 = arith.addf %16, %18 : vector<16x128xf32>
    %20 = math.tanh %19 : vector<16x128xf32>
    %21 = arith.truncf %20 : vector<16x128xf32> to vector<16x128xbf16>
    %c0_15 = arith.constant 0 : index
    %c0_16 = arith.constant 0 : index
    %22 = vector.load %arg8[%c0_15, %c0_16] : memref<1x128xbf16, #tpu.memory_space<vmem>>, vector<1x128xbf16>
    %cst_17 = arith.constant dense<0.000000e+00> : vector<1x16xf32>
    %23 = tpu.matmul %22, %21, %cst_17 {dimension_numbers = #tpu.dot_dimension_numbers<[1], [1], [0], [0], [0, 0, 1, 0], [], []>} : vector<1x128xbf16>, vector<16x128xbf16>, vector<1x16xf32> -> vector<1x16xf32>
    %c0_18 = arith.constant 0 : index
    %c0_19 = arith.constant 0 : index
    %24 = memref.load %arg9[%c0_18, %c0_19] : memref<1x1xf32, #tpu.memory_space<smem>>
    %25 = vector.broadcast %24 : f32 to vector<1x16xf32>
    %26 = arith.addf %23, %25 : vector<1x16xf32>
    %c0_20 = arith.constant 0 : index
    %c0_21 = arith.constant 0 : index
    %27 = vector.load %arg10[%c0_20, %c0_21] : memref<1x16xf32, #tpu.memory_space<vmem>>, vector<1x16xf32>
    tpu.vector_store %arg10[%c0_20, %c0_21], %26 {strides = array<i32>} : memref<1x16xf32, #tpu.memory_space<vmem>>, vector<1x16xf32>,
    return
  }
  func.func @transform_0(%arg0: i32) -> (i32, i32) {
    %c0_i32 = arith.constant 0 : i32
    %c0_i32_0 = arith.constant 0 : i32
    return %arg0, %c0_i32 : i32, i32
  }
  func.func @transform_1(%arg0: i32) -> (i32, i32) {
    %c0_i32 = arith.constant 0 : i32
    %c0_i32_0 = arith.constant 0 : i32
    %c0_i32_1 = arith.constant 0 : i32
    return %c0_i32, %c0_i32_0 : i32, i32
  }
  func.func @transform_2(%arg0: i32) -> (i32, i32) {
    %c0_i32 = arith.constant 0 : i32
    %c0_i32_0 = arith.constant 0 : i32
    %c0_i32_1 = arith.constant 0 : i32
    return %c0_i32, %c0_i32_0 : i32, i32
  }
  func.func @transform_3(%arg0: i32) -> (i32, i32) {
    %c0_i32 = arith.constant 0 : i32
    %c0_i32_0 = arith.constant 0 : i32
    %c0_i32_1 = arith.constant 0 : i32
    return %c0_i32, %c0_i32_0 : i32, i32
  }
  func.func @transform_4(%arg0: i32) -> (i32, i32) {
    %c0_i32 = arith.constant 0 : i32
    %c0_i32_0 = arith.constant 0 : i32
    %c0_i32_1 = arith.constant 0 : i32
    return %c0_i32, %c0_i32_0 : i32, i32
  }
  func.func @transform_5(%arg0: i32) -> (i32, i32) {
    %c0_i32 = arith.constant 0 : i32
    %c0_i32_0 = arith.constant 0 : i32
    %c0_i32_1 = arith.constant 0 : i32
    return %c0_i32, %c0_i32_0 : i32, i32
  }
  func.func @transform_6(%arg0: i32) -> (i32, i32) {
    %c0_i32 = arith.constant 0 : i32
    %c0_i32_0 = arith.constant 0 : i32
    %c0_i32_1 = arith.constant 0 : i32
    return %c0_i32, %c0_i32_0 : i32, i32
  }
  func.func @transform_7(%arg0: i32) -> (i32, i32) {
    %c0_i32 = arith.constant 0 : i32
    %c0_i32_0 = arith.constant 0 : i32
    %c0_i32_1 = arith.constant 0 : i32
    return %c0_i32, %c0_i32_0 : i32, i32
  }
  func.func @transform_8(%arg0: i32) -> (i32, i32) {
    %c0_i32 = arith.constant 0 : i32
    %c0_i32_0 = arith.constant 0 : i32
    %c0_i32_1 = arith.constant 0 : i32
    return %c0_i32, %c0_i32_0 : i32, i32
  }
  func.func @transform_9(%arg0: i32) -> (i32, i32) {
    %c0_i32 = arith.constant 0 : i32
    %c0_i32_0 = arith.constant 0 : i32
    return %c0_i32, %arg0 : i32, i32
  }
}

</mosaic_0001>

<llo_original>
// kernel: a2c_critic_forward.1
$region0: #{a2c_critic_forward.1}
  #allocation0 [shape = 'u32[]', space=smem, size = 0x4, offset = 0x4, fixed_abs, tag = 'smem constant byte address 0x4 - core index']
  #allocation1 [shape = 'u32[144,128]{1,0:T(1,128)}', space=vmem, size = 0x12000, scoped, tag = 'internal scratch']
  #allocation2 [shape = 'f32[1,1]{1,0:T(1,128)S(6)}', space=smem, size = 0x200, scoped, tag = 'scoped memory for a2c_critic_forward.1']
  %s0 = inlined_call_operand.vmem [shape: bf16[16,64], index: 0, kind: input, shape index: {}]
  %s1 = inlined_call_operand.vmem [shape: bf16[64,128], index: 1, kind: input, shape index: {}]
  %s2 = inlined_call_operand.vmem [shape: f32[1,128], index: 2, kind: input, shape index: {}]
  %s3 = inlined_call_operand.vmem [shape: bf16[128,128], index: 3, kind: input, shape index: {}]
  %s4 = inlined_call_operand.vmem [shape: f32[1,128], index: 4, kind: input, shape index: {}]
  %s5 = inlined_call_operand.vmem [shape: bf16[128,128], index: 5, kind: input, shape index: {}]
  %s6 = inlined_call_operand.vmem [shape: f32[1,128], index: 6, kind: input, shape index: {}]
  %s7 = inlined_call_operand.vmem [shape: bf16[1,128], index: 7, kind: input, shape index: {}]
  %s8 = inlined_call_operand.<no memory space> [shape: f32[1,1], index: 8, kind: input, shape index: {}]
  %s9 = inlined_call_operand.vmem [shape: f32[1,16], index: 9, kind: output, shape index: {}]
  %s10 = sld [smem:[#allocation0]]
  $region46: #{a2c_critic_forward.1} parent=0
    _
  %s12 = ssub.s32 1, %s10
  %s13 = scalar_select 0, %s12, %s10
  %14 = sst [smem:[#allocation2]] %s8
  // Predicated region
  $region2: #{a2c_critic_forward.1} parent=0 // pred_check
    _
  $region3: #{a2c_critic_forward.1} parent=0 // pred_check_branch
    %16 = sbr.rel (0) target = $region5
  $region4: #{a2c_critic_forward.1} parent=0 // pred_region
    _
  $region5: #{a2c_critic_forward.1} parent=0 // pred_fallthru
    _
  // Predicated region
  $region6: #{a2c_critic_forward.1} parent=0 // pred_check
    _
  $region7: #{a2c_critic_forward.1} parent=0 // pred_check_branch
    %18 = sbr.rel (0) target = $region9
  $region8: #{a2c_critic_forward.1} parent=0 // pred_region
    _
  $region9: #{a2c_critic_forward.1} parent=0 // pred_fallthru
    _
  // Predicated region
  $region10: #{a2c_critic_forward.1} parent=0 // pred_check
    _
  $region11: #{a2c_critic_forward.1} parent=0 // pred_check_branch
    %20 = sbr.rel (0) target = $region13
  $region12: #{a2c_critic_forward.1} parent=0 // pred_region
    _
  $region13: #{a2c_critic_forward.1} parent=0 // pred_fallthru
    _
  // Predicated region
  $region14: #{a2c_critic_forward.1} parent=0 // pred_check
    _
  $region15: #{a2c_critic_forward.1} parent=0 // pred_check_branch
    %22 = sbr.rel (0) target = $region17
  $region16: #{a2c_critic_forward.1} parent=0 // pred_region
    _
  $region17: #{a2c_critic_forward.1} parent=0 // pred_fallthru
    _
  // Predicated region
  $region18: #{a2c_critic_forward.1} parent=0 // pred_check
    _
  $region19: #{a2c_critic_forward.1} parent=0 // pred_check_branch
    %24 = sbr.rel (0) target = $region21
  $region20: #{a2c_critic_forward.1} parent=0 // pred_region
    _
  $region21: #{a2c_critic_forward.1} parent=0 // pred_fallthru
    _
  // Predicated region
  $region22: #{a2c_critic_forward.1} parent=0 // pred_check
    _
  $region23: #{a2c_critic_forward.1} parent=0 // pred_check_branch
    %26 = sbr.rel (0) target = $region25
  $region24: #{a2c_critic_forward.1} parent=0 // pred_region
    _
  $region25: #{a2c_critic_forward.1} parent=0 // pred_fallthru
    _
  // Predicated region
  $region26: #{a2c_critic_forward.1} parent=0 // pred_check
    _
  $region27: #{a2c_critic_forward.1} parent=0 // pred_check_branch
    %28 = sbr.rel (0) target = $region29
  $region28: #{a2c_critic_forward.1} parent=0 // pred_region
    _
  $region29: #{a2c_critic_forward.1} parent=0 // pred_fallthru
    _
  // Predicated region
  $region30: #{a2c_critic_forward.1} parent=0 // pred_check
    _
  $region31: #{a2c_critic_forward.1} parent=0 // pred_check_branch
    %30 = sbr.rel (0) target = $region33
  $region32: #{a2c_critic_forward.1} parent=0 // pred_region
    _
  $region33: #{a2c_critic_forward.1} parent=0 // pred_fallthru
    _
  // Predicated region
  $region34: #{a2c_critic_forward.1} parent=0 // pred_check
    _
  $region35: #{a2c_critic_forward.1} parent=0 // pred_check_branch
    %32 = sbr.rel (0) target = $region37
  $region36: #{a2c_critic_forward.1} parent=0 // pred_region
    _
  $region37: #{a2c_critic_forward.1} parent=0 // pred_fallthru
    _
  %v34 = vld [vmem:[%s0] sm:$0xf]
  %v35 = vld [vmem:[%s0 + $0x4] sm:$0xf]
  %v36 = vld [vmem:[%s1] sm:$0xf]
  %v37 = vld [vmem:[%s1 + $0x4] sm:$0xf]
  %v38 = vld [vmem:[%s1 + $0x8] sm:$0xf]
  %v39 = vld [vmem:[%s1 + $0xc] sm:$0xf]
  %v40 = vld [vmem:[%s1 + $0x10] sm:$0xf]
  %v41 = vld [vmem:[%s1 + $0x14] sm:$0xf]
  %v42 = vld [vmem:[%s1 + $0x18] sm:$0xf]
  %v43 = vld [vmem:[%s1 + $0x1c] sm:$0xf]
  %v44 = vld [vmem:[%s2] sm:$0x1]
  %v46 = vlaneseq
  %v47 = vshrl.u32 %v46, 7
  %v48 = vsub.s32 0, %v47
  %v49 = vrot.slane %v44, %v48
  %v53 = vunpack.c.l.b16 %v34
  %v54 = vunpack.c.l.b16 %v35
  %v55 = vpack.c.b16 %v54, %v53
  %v64 = vunpack.c.l.b16 %v36
  %v65 = vunpack.c.l.b16 %v37
  %v66 = vunpack.c.l.b16 %v38
  %v67 = vunpack.c.l.b16 %v39
  %v68 = vunpack.c.l.b16 %v40
  %v69 = vunpack.c.l.b16 %v41
  %v70 = vunpack.c.l.b16 %v42
  %v71 = vunpack.c.l.b16 %v43
  %v72 = vpack.c.b16 %v65, %v64
  %v73 = vpack.c.b16 %v67, %v66
  %v74 = vpack.c.b16 %v69, %v68
  %v75 = vpack.c.b16 %v71, %v70
  %vm80 = vcmask 523264
  %v82 = vsel %vm80, %v55, 0
  %84 = vmatprep.subr.bf16.mxu0 0
  %85 = vmatpush1.bf16.msra.mxu0 0
  %86 = vmatprep.subr.bf16.mxu0 0
  %87 = vmatpush1.bf16.msra.mxu0 0
  %88 = vmatprep.subr.bf16.mxu0 0
  %89 = vmatpush1.bf16.msra.mxu0 0
  %90 = vmatprep.subr.bf16.mxu0 0
  %91 = vmatpush1.bf16.msra.mxu0 0
  %92 = vmatprep.subr.bf16.mxu0 0
  %93 = vmatpush1.bf16.msra.mxu0 %v75
  %94 = vmatprep.subr.bf16.mxu0 0
  %95 = vmatpush1.bf16.msra.mxu0 %v74
  %96 = vmatprep.subr.bf16.mxu0 0
  %97 = vmatpush1.bf16.msra.mxu0 %v73
  %98 = vmatprep.subr.bf16.mxu0 0
  %99 = vmatpush1.bf16.msra.mxu0 %v72
  %100 = vmatprep.subr.bf16.mxu0 0
  %101 = vmatpush2.bf16.msra.mxu0 0
  %102 = vmatprep.subr.bf16.mxu0 0
  %103 = vmatpush2.bf16.msra.mxu0 0
  %104 = vmatprep.subr.bf16.mxu0 0
  %105 = vmatpush2.bf16.msra.mxu0 0
  %106 = vmatprep.subr.bf16.mxu0 0
  %107 = vmatpush2.bf16.msra.mxu0 0
  %108 = vmatprep.subr.bf16.mxu0 0
  %109 = vmatpush2.bf16.msra.mxu0 0
  %110 = vmatprep.subr.bf16.mxu0 0
  %111 = vmatpush2.bf16.msra.mxu0 0
  %112 = vmatprep.subr.bf16.mxu0 0
  %113 = vmatpush2.bf16.msra.mxu0 0
  %114 = vmatprep.subr.bf16.mxu0 0
  %115 = vmatpush2.bf16.msra.mxu0 0
  %116 = vmatprep.mubr.bf16.mxu0 0
  %117 = vmatmul.mubr.bf16.gmra.mxu0 %v82
  %v118 = vpop.f32.mrf.mxu0
  %v119 = vadd.f32 %v49, %v118
  %v120 = vpop.f32.mrf.mxu0
  %v121 = vpop.f32.mrf.mxu0
  %v122 = vadd.f32 %v49, %v121
  %v123 = vpop.f32.mrf.mxu0
  %124 = vdwg.mxu0
  %v125 = vtanh.pop %v119
  %v126 = vtanh.pop %v122
  %v127 = vpack.c.bf16 %v126, %v125
  %v128 = vld [vmem:[%s3] sm:$0xf]
  %v129 = vld [vmem:[%s3 + $0x4] sm:$0xf]
  %v130 = vld [vmem:[%s3 + $0x8] sm:$0xf]
  %v131 = vld [vmem:[%s3 + $0xc] sm:$0xf]
  %v132 = vld [vmem:[%s3 + $0x10] sm:$0xf]
  %v133 = vld [vmem:[%s3 + $0x14] sm:$0xf]
  %v134 = vld [vmem:[%s3 + $0x18] sm:$0xf]
  %v135 = vld [vmem:[%s3 + $0x1c] sm:$0xf]
  %v136 = vld [vmem:[%s3 + $0x20] sm:$0xf]
  %v137 = vld [vmem:[%s3 + $0x24] sm:$0xf]
  %v138 = vld [vmem:[%s3 + $0x28] sm:$0xf]
  %v139 = vld [vmem:[%s3 + $0x2c] sm:$0xf]
  %v140 = vld [vmem:[%s3 + $0x30] sm:$0xf]
  %v141 = vld [vmem:[%s3 + $0x34] sm:$0xf]
  %v142 = vld [vmem:[%s3 + $0x38] sm:$0xf]
  %v143 = vld [vmem:[%s3 + $0x3c] sm:$0xf]
  %v144 = vld [vmem:[%s4] sm:$0x1]
  %v146 = vlaneseq
  %v147 = vshrl.u32 %v146, 7
  %v148 = vsub.s32 0, %v147
  %v149 = vrot.slane %v144, %v148
  %v167 = vunpack.c.l.b16 %v128
  %v168 = vunpack.c.l.b16 %v129
  %v169 = vunpack.c.l.b16 %v130
  %v170 = vunpack.c.l.b16 %v131
  %v171 = vunpack.c.l.b16 %v132
  %v172 = vunpack.c.l.b16 %v133
  %v173 = vunpack.c.l.b16 %v134
  %v174 = vunpack.c.l.b16 %v135
  %v175 = vunpack.c.l.b16 %v136
  %v176 = vunpack.c.l.b16 %v137
  %v177 = vunpack.c.l.b16 %v138
  %v178 = vunpack.c.l.b16 %v139
  %v179 = vunpack.c.l.b16 %v140
  %v180 = vunpack.c.l.b16 %v141
  %v181 = vunpack.c.l.b16 %v142
  %v182 = vunpack.c.l.b16 %v143
  %v183 = vpack.c.b16 %v168, %v167
  %v184 = vpack.c.b16 %v170, %v169
  %v185 = vpack.c.b16 %v172, %v171
  %v186 = vpack.c.b16 %v174, %v173
  %v187 = vpack.c.b16 %v176, %v175
  %v188 = vpack.c.b16 %v178, %v177
  %v189 = vpack.c.b16 %v180, %v179
  %v190 = vpack.c.b16 %v182, %v181
  %199 = vmatprep.subr.bf16.mxu0 0
  %200 = vmatpush1.bf16.msra.mxu0 %v190
  %201 = vmatprep.subr.bf16.mxu0 0
  %202 = vmatpush1.bf16.msra.mxu0 %v189
  %203 = vmatprep.subr.bf16.mxu0 0
  %204 = vmatpush1.bf16.msra.mxu0 %v188
  %205 = vmatprep.subr.bf16.mxu0 0
  %206 = vmatpush1.bf16.msra.mxu0 %v187
  %207 = vmatprep.subr.bf16.mxu0 0
  %208 = vmatpush1.bf16.msra.mxu0 %v186
  %209 = vmatprep.subr.bf16.mxu0 0
  %210 = vmatpush1.bf16.msra.mxu0 %v185
  %211 = vmatprep.subr.bf16.mxu0 0
  %212 = vmatpush1.bf16.msra.mxu0 %v184
  %213 = vmatprep.subr.bf16.mxu0 0
  %214 = vmatpush1.bf16.msra.mxu0 %v183
  %215 = vmatprep.subr.bf16.mxu0 0
  %216 = vmatpush2.bf16.msra.mxu0 0
  %217 = vmatprep.subr.bf16.mxu0 0
  %218 = vmatpush2.bf16.msra.mxu0 0
  %219 = vmatprep.subr.bf16.mxu0 0
  %220 = vmatpush2.bf16.msra.mxu0 0
  %221 = vmatprep.subr.bf16.mxu0 0
  %222 = vmatpush2.bf16.msra.mxu0 0
  %223 = vmatprep.subr.bf16.mxu0 0
  %224 = vmatpush2.bf16.msra.mxu0 0
  %225 = vmatprep.subr.bf16.mxu0 0
  %226 = vmatpush2.bf16.msra.mxu0 0
  %227 = vmatprep.subr.bf16.mxu0 0
  %228 = vmatpush2.bf16.msra.mxu0 0
  %229 = vmatprep.subr.bf16.mxu0 0
  %230 = vmatpush2.bf16.msra.mxu0 0
  %231 = vmatprep.mubr.bf16.mxu0 0
  %232 = vmatmul.mubr.bf16.gmra.mxu0 %v127
  %v233 = vpop.f32.mrf.mxu0
  %v234 = vadd.f32 %v149, %v233
  %v235 = vpop.f32.mrf.mxu0
  %v236 = vpop.f32.mrf.mxu0
  %v237 = vadd.f32 %v149, %v236
  %v238 = vpop.f32.mrf.mxu0
  %239 = vdwg.mxu0
  %v240 = vtanh.pop %v234
  %v241 = vtanh.pop %v237
  %v242 = vpack.c.bf16 %v241, %v240
  %v243 = vld [vmem:[%s5] sm:$0xf]
  %v244 = vld [vmem:[%s5 + $0x4] sm:$0xf]
  %v245 = vld [vmem:[%s5 + $0x8] sm:$0xf]
  %v246 = vld [vmem:[%s5 + $0xc] sm:$0xf]
  %v247 = vld [vmem:[%s5 + $0x10] sm:$0xf]
  %v248 = vld [vmem:[%s5 + $0x14] sm:$0xf]
  %v249 = vld [vmem:[%s5 + $0x18] sm:$0xf]
  %v250 = vld [vmem:[%s5 + $0x1c] sm:$0xf]
  %v251 = vld [vmem:[%s5 + $0x20] sm:$0xf]
  %v252 = vld [vmem:[%s5 + $0x24] sm:$0xf]
  %v253 = vld [vmem:[%s5 + $0x28] sm:$0xf]
  %v254 = vld [vmem:[%s5 + $0x2c] sm:$0xf]
  %v255 = vld [vmem:[%s5 + $0x30] sm:$0xf]
  %v256 = vld [vmem:[%s5 + $0x34] sm:$0xf]
  %v257 = vld [vmem:[%s5 + $0x38] sm:$0xf]
  %v258 = vld [vmem:[%s5 + $0x3c] sm:$0xf]
  %v259 = vld [vmem:[%s6] sm:$0x1]
  %v261 = vlaneseq
  %v262 = vshrl.u32 %v261, 7
  %v263 = vsub.s32 0, %v262
  %v264 = vrot.slane %v259, %v263
  %v282 = vunpack.c.l.b16 %v243
  %v283 = vunpack.c.l.b16 %v244
  %v284 = vunpack.c.l.b16 %v245
  %v285 = vunpack.c.l.b16 %v246
  %v286 = vunpack.c.l.b16 %v247
  %v287 = vunpack.c.l.b16 %v248
  %v288 = vunpack.c.l.b16 %v249
  %v289 = vunpack.c.l.b16 %v250
  %v290 = vunpack.c.l.b16 %v251
  %v291 = vunpack.c.l.b16 %v252
  %v292 = vunpack.c.l.b16 %v253
  %v293 = vunpack.c.l.b16 %v254
  %v294 = vunpack.c.l.b16 %v255
  %v295 = vunpack.c.l.b16 %v256
  %v296 = vunpack.c.l.b16 %v257
  %v297 = vunpack.c.l.b16 %v258
  %v298 = vpack.c.b16 %v283, %v282
  %v299 = vpack.c.b16 %v285, %v284
  %v300 = vpack.c.b16 %v287, %v286
  %v301 = vpack.c.b16 %v289, %v288
  %v302 = vpack.c.b16 %v291, %v290
  %v303 = vpack.c.b16 %v293, %v292
  %v304 = vpack.c.b16 %v295, %v294
  %v305 = vpack.c.b16 %v297, %v296
  %314 = vmatprep.subr.bf16.mxu0 0
  %315 = vmatpush1.bf16.msra.mxu0 %v305
  %316 = vmatprep.subr.bf16.mxu0 0
  %317 = vmatpush1.bf16.msra.mxu0 %v304
  %318 = vmatprep.subr.bf16.mxu0 0
  %319 = vmatpush1.bf16.msra.mxu0 %v303
  %320 = vmatprep.subr.bf16.mxu0 0
  %321 = vmatpush1.bf16.msra.mxu0 %v302
  %322 = vmatprep.subr.bf16.mxu0 0
  %323 = vmatpush1.bf16.msra.mxu0 %v301
  %324 = vmatprep.subr.bf16.mxu0 0
  %325 = vmatpush1.bf16.msra.mxu0 %v300
  %326 = vmatprep.subr.bf16.mxu0 0
  %327 = vmatpush1.bf16.msra.mxu0 %v299
  %328 = vmatprep.subr.bf16.mxu0 0
  %329 = vmatpush1.bf16.msra.mxu0 %v298
  %330 = vmatprep.subr.bf16.mxu0 0
  %331 = vmatpush2.bf16.msra.mxu0 0
  %332 = vmatprep.subr.bf16.mxu0 0
  %333 = vmatpush2.bf16.msra.mxu0 0
  %334 = vmatprep.subr.bf16.mxu0 0
  %335 = vmatpush2.bf16.msra.mxu0 0
  %336 = vmatprep.subr.bf16.mxu0 0
  %337 = vmatpush2.bf16.msra.mxu0 0
  %338 = vmatprep.subr.bf16.mxu0 0
  %339 = vmatpush2.bf16.msra.mxu0 0
  %340 = vmatprep.subr.bf16.mxu0 0
  %341 = vmatpush2.bf16.msra.mxu0 0
  %342 = vmatprep.subr.bf16.mxu0 0
  %343 = vmatpush2.bf16.msra.mxu0 0
  %344 = vmatprep.subr.bf16.mxu0 0
  %345 = vmatpush2.bf16.msra.mxu0 0
  %346 = vmatprep.mubr.bf16.mxu0 0
  %347 = vmatmul.mubr.bf16.gmra.mxu0 %v242
  %v348 = vpop.f32.mrf.mxu0
  %v349 = vadd.f32 %v264, %v348
  %v350 = vpop.f32.mrf.mxu0
  %v351 = vpop.f32.mrf.mxu0
  %v352 = vadd.f32 %v264, %v351
  %v353 = vpop.f32.mrf.mxu0
  %354 = vdwg.mxu0
  %v355 = vtanh.pop %v349
  %v356 = vtanh.pop %v352
  %v357 = vpack.c.bf16 %v356, %v355
  %v358 = vld [vmem:[%s7] sm:$0x1]
  %s359 = sld [smem:[#allocation2]]
  %v360 = vstv %s359
  %361 = vmatprep.subr.bf16.mxu0 0
  %362 = vmatpush1.bf16.xpose.msra.mxu0 0
  %363 = vmatprep.subr.bf16.mxu0 0
  %364 = vmatpush1.bf16.xpose.msra.mxu0 0
  %365 = vmatprep.subr.bf16.mxu0 0
  %366 = vmatpush1.bf16.xpose.msra.mxu0 0
  %367 = vmatprep.subr.bf16.mxu0 0
  %368 = vmatpush1.bf16.xpose.msra.mxu0 0
  %369 = vmatprep.subr.bf16.mxu0 0
  %370 = vmatpush1.bf16.xpose.msra.mxu0 0
  %371 = vmatprep.subr.bf16.mxu0 0
  %372 = vmatpush1.bf16.xpose.msra.mxu0 0
  %373 = vmatprep.subr.bf16.mxu0 0
  %374 = vmatpush1.bf16.xpose.msra.mxu0 0
  %375 = vmatprep.subr.bf16.mxu0 0
  %376 = vmatpush1.bf16.xpose.msra.mxu0 %v357
  %377 = vmatprep.subr.bf16.mxu0 0
  %378 = vmatpush2.bf16.xpose.msra.mxu0 0
  %379 = vmatprep.subr.bf16.mxu0 0
  %380 = vmatpush2.bf16.xpose.msra.mxu0 0
  %381 = vmatprep.subr.bf16.mxu0 0
  %382 = vmatpush2.bf16.xpose.msra.mxu0 0
  %383 = vmatprep.subr.bf16.mxu0 0
  %384 = vmatpush2.bf16.xpose.msra.mxu0 0
  %385 = vmatprep.subr.bf16.mxu0 0
  %386 = vmatpush2.bf16.xpose.msra.mxu0 0
  %387 = vmatprep.subr.bf16.mxu0 0
  %388 = vmatpush2.bf16.xpose.msra.mxu0 0
  %389 = vmatprep.subr.bf16.mxu0 0
  %390 = vmatpush2.bf16.xpose.msra.mxu0 0
  %391 = vmatprep.subr.bf16.mxu0 0
  %392 = vmatpush2.bf16.xpose.msra.mxu0 0
  %393 = vmatprep.mubr.bf16.mxu0 0
  %394 = vmatmul.mubr.bf16.gmra.mxu0 %v358
  %v395 = vpop.f32.mrf.mxu0
  %v396 = vadd.f32 %v360, %v395
  %v397 = vpop.f32.mrf.mxu0
  %v398 = vpop.f32.mrf.mxu0
  %v399 = vpop.f32.mrf.mxu0
  %400 = vdwg.mxu0
  %vm401 = vcmask 122880
  %402 = vst.msk [vmem:[%s9] sm:$0x1] %vm401, %v396
  // Predicated region
  $region38: #{a2c_critic_forward.1} parent=0 // pred_check
    _
  $region39: #{a2c_critic_forward.1} parent=0 // pred_check_branch
    %404 = sbr.rel (0) target = $region41
  $region40: #{a2c_critic_forward.1} parent=0 // pred_region
    _
  $region41: #{a2c_critic_forward.1} parent=0 // pred_fallthru
    _
  // Predicated region
  $region42: #{a2c_critic_forward.1} parent=0 // pred_check
    _
  $region43: #{a2c_critic_forward.1} parent=0 // pred_check_branch
    %406 = sbr.rel (0) target = $region45
  $region44: #{a2c_critic_forward.1} parent=0 // pred_region
    _
  $region45: #{a2c_critic_forward.1} parent=0 // pred_fallthru
    _

</llo_original>
